<compile_context>
chip_gen: v6e
topology: v6e:2x2x1
jax: 0.10.0
libtpu: 0.0.40
codegen_flags: <defaults>
</compile_context>

<pallas_src>
import functools

import jax
import jax.numpy as jnp
import numpy as np
from jax import lax
from jax.experimental import pallas as pl
from jax.experimental.pallas import tpu as pltpu


def _round_up(x, m):
    return (x + m - 1) // m * m


def _pad_to(a, shape):
    out = jnp.zeros(shape, jnp.float32)
    return out.at[tuple(slice(0, s) for s in a.shape)].set(a.astype(jnp.float32))


# -----------------------------------------------------------------------------
# Kernel 1: masked mean-pool (encoder stand-in reduction)
#   cls[b] = sum_s emb[b,s,:] * mask[b,s] / max(sum_s mask[b,s], 1)
# grid = (Bp//TB, Sp//TS); batch axis parallel, sequence axis = reduction.
# -----------------------------------------------------------------------------
def _pool_kernel(emb_ref, mask_ref, cls_ref, cnt_ref):
    j = pl.program_id(1)

    @pl.when(j == 0)
    def _():
        cls_ref[...] = jnp.zeros_like(cls_ref)
        cnt_ref[...] = jnp.zeros_like(cnt_ref)

    m = mask_ref[...]                               # (TB, TS, 1)
    e = emb_ref[...]                                # (TB, TS, Hp)
    cls_ref[...] += jnp.sum(e * m, axis=1)          # (TB, Hp)
    cnt_ref[...] += jnp.sum(m, axis=1)              # (TB, 1)

    @pl.when(j == pl.num_programs(1) - 1)
    def _():
        cls_ref[...] = cls_ref[...] / jnp.maximum(cnt_ref[...], 1.0)


def masked_mean_pool(emb3, mask3, *, tb, ts):
    Bp, Sp, Hp = emb3.shape
    grid = (Bp // tb, Sp // ts)
    return pl.pallas_call(
        _pool_kernel,
        out_shape=jax.ShapeDtypeStruct((Bp, Hp), jnp.float32),
        grid_spec=pltpu.PrefetchScalarGridSpec(
            num_scalar_prefetch=0,
            grid=grid,
            in_specs=[
                pl.BlockSpec((tb, ts, Hp), lambda i, j: (i, j, 0)),
                pl.BlockSpec((tb, ts, 1), lambda i, j: (i, j, 0)),
            ],
            out_specs=pl.BlockSpec((tb, Hp), lambda i, j: (i, 0)),
            scratch_shapes=[pltpu.VMEM((tb, 1), jnp.float32)],
        ),
        compiler_params=pltpu.CompilerParams(
            dimension_semantics=("parallel", "arbitrary")),
    )(emb3, mask3)


# -----------------------------------------------------------------------------
# Kernel 2: FUSED fine_tuning_layers head + weighted focal loss ('wfl')
#   h1 = relu(x @ W1p + b1p)          (Dropout(0.2) -> identity at inference)
#   h2 = relu(h1 @ W2p + b2p)
#   p  = sigmoid(h2 @ W3p + b3p)      -> lane-dense [TB,128] store (col 0 real)
#   bce= -(cw1*y*(1-p)^g*log p + cw0*(1-y)*p^g*log(1-p))  (clipped, row-masked)
#   loss partial sum per batch tile -> (1,8,128) lane-dense slab
# TODO(synk): training-mode dropout (pltpu.prng_*) is not emitted; eval only.
# -----------------------------------------------------------------------------
def _head_loss_kernel(x_ref, y_ref, w1_ref, b1_ref, w2_ref, b2_ref,
                      w3_ref, b3_ref, logits_ref, loss_ref,
                      *, cw0, cw1, gamma, n_valid, tb):
    x = x_ref[...]                                                   # (TB, Hp) f32
    h1 = jnp.maximum(
        jnp.dot(x, w1_ref[...], preferred_element_type=jnp.float32) + b1_ref[...],
        0.0)
    h2 = jnp.maximum(
        jnp.dot(h1, w2_ref[...], preferred_element_type=jnp.float32) + b2_ref[...],
        0.0)
    z = jnp.dot(h2, w3_ref[...], preferred_element_type=jnp.float32) + b3_ref[...]
    # sigmoid: exp on EUP + reciprocal (exact; approx=True possible if parity
    # tolerance is relaxed)
    p_full = pl.reciprocal(1.0 + jnp.exp(-z))                        # (TB, 128)
    logits_ref[...] = p_full                                         # lane-dense store

    # weighted focal loss on the real logit column of this batch tile
    p = jnp.clip(p_full[:, 0:1], 1e-7, 1.0 - 1e-7)                   # (TB, 1)
    y = y_ref[...]                                                   # (TB, 1)
    log_p = jnp.log(p)
    log_1mp = jnp.log(1.0 - p)
    pow_1mp = jnp.exp(gamma * log_1mp)                               # (1-p)**gamma
    pow_p = jnp.exp(gamma * log_p)                                   # p**gamma
    bce = -(cw1 * y * pow_1mp * log_p + cw0 * (1.0 - y) * pow_p * log_1mp)
    row = pl.program_id(0) * tb + lax.broadcasted_iota(jnp.int32, (tb, 1), 0)
    bce = jnp.where(row < n_valid, bce, 0.0)                         # drop pad rows
    loss_ref[...] = jnp.full(loss_ref.shape, jnp.sum(bce), jnp.float32)


def fused_head_and_loss(x, labels2d, head_p, *, tb, n_valid, class_weights, gamma):
    Bp, Hp = x.shape
    grid = (Bp // tb,)
    kernel = functools.partial(
        _head_loss_kernel,
        cw0=float(class_weights[0]), cw1=float(class_weights[1]),
        gamma=float(gamma), n_valid=int(n_valid), tb=int(tb))
    return pl.pallas_call(
        kernel,
        out_shape=(jax.ShapeDtypeStruct((Bp, 128), jnp.float32),
                   jax.ShapeDtypeStruct((grid[0], 8, 128), jnp.float32)),
        grid_spec=pltpu.PrefetchScalarGridSpec(
            num_scalar_prefetch=0,
            grid=grid,
            in_specs=[
                pl.BlockSpec((tb, Hp), lambda i: (i, 0)),      # x tile
                pl.BlockSpec((tb, 1), lambda i: (i, 0)),       # labels tile
                pl.BlockSpec((Hp, 128), lambda i: (0, 0)),     # W1 (padded)
                pl.BlockSpec((1, 128), lambda i: (0, 0)),      # b1
                pl.BlockSpec((128, 128), lambda i: (0, 0)),    # W2
                pl.BlockSpec((1, 128), lambda i: (0, 0)),      # b2
                pl.BlockSpec((128, 128), lambda i: (0, 0)),    # W3
                pl.BlockSpec((1, 128), lambda i: (0, 0)),      # b3
            ],
            out_specs=[
                pl.BlockSpec((tb, 128), lambda i: (i, 0)),     # lane-dense logits
                pl.BlockSpec((1, 8, 128), lambda i: (i, 0, 0)),  # partial loss
            ],
        ),
        compiler_params=pltpu.CompilerParams(
            dimension_semantics=("parallel",)),
    )(x, labels2d, head_p["w1"], head_p["b1"], head_p["w2"], head_p["b2"],
      head_p["w3"], head_p["b3"])


# -----------------------------------------------------------------------------
# Parameter init (deterministic) + padding + forward
# -----------------------------------------------------------------------------
def init_params(key, vocab_size, hidden_size):
    ks = jax.random.split(key, 4)

    def linear(kw, fan_in, fan_out):
        bound = 1.0 / np.sqrt(fan_in)
        w = jax.random.uniform(kw, (fan_in, fan_out), jnp.float32, -bound, bound)
        b = jnp.zeros((1, fan_out), jnp.float32)
        return w, b

    emb = jax.random.normal(ks[0], (vocab_size, hidden_size), jnp.float32) * 0.02
    w1, b1 = linear(ks[1], hidden_size, 100)
    w2, b2 = linear(ks[2], 100, 50)
    w3, b3 = linear(ks[3], 50, 1)
    return dict(emb=emb, w1=w1, b1=b1, w2=w2, b2=b2, w3=w3, b3=b3)


def pad_head_params(params, hp):
    # zero padding is numerically inert through the dots / ReLU; padded output
    # columns (sigmoid(0)=0.5) are sliced off / masked before use.
    return dict(
        w1=_pad_to(params["w1"], (hp, 128)), b1=_pad_to(params["b1"], (1, 128)),
        w2=_pad_to(params["w2"], (128, 128)), b2=_pad_to(params["b2"], (1, 128)),
        w3=_pad_to(params["w3"], (128, 128)), b3=_pad_to(params["b3"], (1, 128)))


def model_forward(params, input_ids, attention_mask, labels=None,
                  class_weights=(0.4, 0.6), gamma=2.0, tb_max=256):
    B, S = input_ids.shape
    H = params["emb"].shape[1]
    Hp = _round_up(max(H, 128), 128)

    # batch tiling (TB multiple of 8, pads survive v7x's 64 MiB VMEM)
    tb = min(tb_max, _round_up(B, 8))
    Bp = _round_up(B, tb)

    # sequence tiling for the pooling kernel: keep each block <= ~4 MiB
    max_ts = max(8, (4 * 1024 * 1024) // (tb * Hp * 4) // 8 * 8)
    ts = min(_round_up(S, 8), max_ts)
    Sp = _round_up(S, ts)

    ids_p = jnp.zeros((Bp, Sp), input_ids.dtype).at[:B, :S].set(input_ids)
    mask_p = jnp.zeros((Bp, Sp), jnp.float32).at[:B, :S].set(
        attention_mask.astype(jnp.float32))

    # ---- encoder stand-in ----------------------------------------------------
    # TODO(synk): real module runs AutoModel('xlm-roberta-base') and takes
    # last_hidden_state[:, 0]; approximated here by an embedding gather (plain
    # JAX) + a Pallas masked mean-pool over the sequence.
    emb_tbl = jnp.pad(params["emb"], ((0, 0), (0, Hp - H)))          # [V, Hp]
    emb3 = emb_tbl[ids_p]                                            # [Bp, Sp, Hp]
    mask3 = mask_p[..., None]                                        # [Bp, Sp, 1]
    cls = masked_mean_pool(emb3, mask3, tb=tb, ts=ts)                # [Bp, Hp]

    # ---- fused fine_tuning_layers head + weighted focal loss (Pallas) --------
    head_p = pad_head_params(params, Hp)
    if labels is None:
        labels2d = jnp.zeros((Bp, 1), jnp.float32)
    else:
        labels2d = jnp.zeros((Bp, 1), jnp.float32).at[:B, 0].set(
            labels.astype(jnp.float32))
    logits_pad, loss_parts = fused_head_and_loss(
        cls, labels2d, head_p, tb=tb, n_valid=B,
        class_weights=class_weights, gamma=gamma)

    logits = logits_pad[:B, 0]                                       # .view(-1)
    loss = None if labels is None else loss_parts[:, 0, 0].sum() / B
    return loss, logits


# -----------------------------------------------------------------------------
# Reference (plain JAX) for a numerical sanity check.
# -----------------------------------------------------------------------------
def reference_forward(params, input_ids, attention_mask, labels,
                      class_weights=(0.4, 0.6), gamma=2.0):
    emb = params["emb"][input_ids]
    mask = attention_mask.astype(jnp.float32)[..., None]
    cls = jnp.sum(emb * mask, axis=1) / jnp.maximum(jnp.sum(mask, axis=1), 1.0)
    h1 = jax.nn.relu(cls @ params["w1"] + params["b1"])
    h2 = jax.nn.relu(h1 @ params["w2"] + params["b2"])
    logits = jax.nn.sigmoid(h2 @ params["w3"] + params["b3"]).reshape(-1)
    p = jnp.clip(logits, 1e-7, 1.0 - 1e-7)
    y = labels
    cw0, cw1 = class_weights
    bce = -(cw1 * y * (1 - p) ** gamma * jnp.log(p)
            + cw0 * (1 - y) * p ** gamma * jnp.log(1 - p))
    return jnp.mean(bce), logits


if __name__ == "__main__":
    B, S, V, H = 8, 16, 64, 32   # batch, seq, vocab, encoder hidden (demo sizes)
    key = jax.random.PRNGKey(0)
    k_par, k_ids, k_msk, k_lab = jax.random.split(key, 4)

    params = init_params(k_par, V, H)
    input_ids = jax.random.randint(k_ids, (B, S), 0, V, dtype=jnp.int32)
    attention_mask = jnp.concatenate(
        [jnp.ones((B, 1), jnp.int32),
         (jax.random.uniform(k_msk, (B, S - 1)) > 0.3).astype(jnp.int32)], axis=1)
    labels = jax.random.bernoulli(k_lab, 0.5, (B,)).astype(jnp.float32)

    loss, logits = model_forward(params, input_ids, attention_mask, labels)
    jax.block_until_ready((loss, logits))

    ref_loss, ref_logits = reference_forward(params, input_ids, attention_mask, labels)
    assert logits.shape == (B,)
    assert np.allclose(np.asarray(logits), np.asarray(ref_logits), atol=1e-5)
    assert np.allclose(np.asarray(loss), np.asarray(ref_loss), atol=1e-5)

    print("KERNEL_OK")
</pallas_src>

<mosaic_0001>
module attributes {stable_mosaic.version = 11 : i64} {
  func.func @_pool_kernel(%arg0: i32, %arg1: i32, %arg2: memref<8x16x128xf32, #tpu.memory_space<vmem>>, %arg3: memref<8x16x1xf32, #tpu.memory_space<vmem>>, %arg4: memref<8x128xf32, #tpu.memory_space<vmem>>, %arg5: memref<8x1xf32, #tpu.memory_space<vmem>>) attributes {dimension_semantics = [#tpu.dimension_semantics<parallel>, #tpu.dimension_semantics<arbitrary>], iteration_bounds = array<i64: 1, 1>, scalar_prefetch = 0 : i64, scratch_operands = 1 : i64, tpu.core_type = #tpu.core_type<tc>, window_params = [{transform_indices = @transform_0, window_bounds = array<i64: 8, 16, 128>}, {transform_indices = @transform_1, window_bounds = array<i64: 8, 16, 1>}, {transform_indices = @transform_2, window_bounds = array<i64: 8, 128>}]} {
    %c0_i32 = arith.constant 0 : i32
    %0 = arith.cmpi eq, %arg1, %c0_i32 : i32
    %1 = arith.extui %0 : i1 to i32
    %c0_i32_0 = arith.constant 0 : i32
    %2 = arith.cmpi ne, %1, %c0_i32_0 : i32
    scf.if %2 {
      %cst_17 = arith.constant 0.000000e+00 : f32
      %18 = vector.broadcast %cst_17 : f32 to vector<8x128xf32>
      %c0_18 = arith.constant 0 : index
      %c0_19 = arith.constant 0 : index
      %19 = vector.load %arg4[%c0_18, %c0_19] : memref<8x128xf32, #tpu.memory_space<vmem>>, vector<8x128xf32>
      tpu.vector_store %arg4[%c0_18, %c0_19], %18 {strides = array<i32>} : memref<8x128xf32, #tpu.memory_space<vmem>>, vector<8x128xf32>,
      %cst_20 = arith.constant 0.000000e+00 : f32
      %20 = vector.broadcast %cst_20 : f32 to vector<8x1xf32>
      %c0_21 = arith.constant 0 : index
      %c0_22 = arith.constant 0 : index
      %21 = vector.load %arg5[%c0_21, %c0_22] : memref<8x1xf32, #tpu.memory_space<vmem>>, vector<8x1xf32>
      tpu.vector_store %arg5[%c0_21, %c0_22], %20 {strides = array<i32>} : memref<8x1xf32, #tpu.memory_space<vmem>>, vector<8x1xf32>,
    } else {
    }
    %c0 = arith.constant 0 : index
    %c0_1 = arith.constant 0 : index
    %c0_2 = arith.constant 0 : index
    %3 = vector.load %arg3[%c0, %c0_1, %c0_2] : memref<8x16x1xf32, #tpu.memory_space<vmem>>, vector<8x16x1xf32>
    %c0_3 = arith.constant 0 : index
    %c0_4 = arith.constant 0 : index
    %c0_5 = arith.constant 0 : index
    %4 = vector.load %arg2[%c0_3, %c0_4, %c0_5] : memref<8x16x128xf32, #tpu.memory_space<vmem>>, vector<8x16x128xf32>
    %c0_6 = arith.constant 0 : index
    %c0_7 = arith.constant 0 : index
    %5 = vector.load %arg4[%c0_6, %c0_7] : memref<8x128xf32, #tpu.memory_space<vmem>>, vector<8x128xf32>
    %6 = vector.broadcast %3 : vector<8x16x1xf32> to vector<8x16x128xf32>
    %7 = arith.mulf %4, %6 : vector<8x16x128xf32>
    %cst = arith.constant dense<0.000000e+00> : vector<8x128xf32>
    %8 = vector.multi_reduction <add>, %7, %cst [1] : vector<8x16x128xf32> to vector<8x128xf32>
    %9 = arith.addf %5, %8 : vector<8x128xf32>
    %c0_8 = arith.constant 0 : index
    %c0_9 = arith.constant 0 : index
    %10 = vector.load %arg4[%c0_8, %c0_9] : memref<8x128xf32, #tpu.memory_space<vmem>>, vector<8x128xf32>
    tpu.vector_store %arg4[%c0_8, %c0_9], %9 {strides = array<i32>} : memref<8x128xf32, #tpu.memory_space<vmem>>, vector<8x128xf32>,
    %c0_10 = arith.constant 0 : index
    %c0_11 = arith.constant 0 : index
    %11 = vector.load %arg5[%c0_10, %c0_11] : memref<8x1xf32, #tpu.memory_space<vmem>>, vector<8x1xf32>
    %cst_12 = arith.constant dense<0.000000e+00> : vector<8x1xf32>
    %12 = vector.multi_reduction <add>, %3, %cst_12 [1] : vector<8x16x1xf32> to vector<8x1xf32>
    %13 = arith.addf %11, %12 : vector<8x1xf32>
    %c0_13 = arith.constant 0 : index
    %c0_14 = arith.constant 0 : index
    %14 = vector.load %arg5[%c0_13, %c0_14] : memref<8x1xf32, #tpu.memory_space<vmem>>, vector<8x1xf32>
    tpu.vector_store %arg5[%c0_13, %c0_14], %13 {strides = array<i32>} : memref<8x1xf32, #tpu.memory_space<vmem>>, vector<8x1xf32>,
    %c0_i32_15 = arith.constant 0 : i32
    %15 = arith.cmpi eq, %arg1, %c0_i32_15 : i32
    %16 = arith.extui %15 : i1 to i32
    %c0_i32_16 = arith.constant 0 : i32
    %17 = arith.cmpi ne, %16, %c0_i32_16 : i32
    scf.if %17 {
      %c0_17 = arith.constant 0 : index
      %c0_18 = arith.constant 0 : index
      %18 = vector.load %arg4[%c0_17, %c0_18] : memref<8x128xf32, #tpu.memory_space<vmem>>, vector<8x128xf32>
      %c0_19 = arith.constant 0 : index
      %c0_20 = arith.constant 0 : index
      %19 = vector.load %arg5[%c0_19, %c0_20] : memref<8x1xf32, #tpu.memory_space<vmem>>, vector<8x1xf32>
      %cst_21 = arith.constant 1.000000e+00 : f32
      %20 = vector.broadcast %cst_21 : f32 to vector<8x1xf32>
      %21 = arith.maximumf %19, %20 : vector<8x1xf32>
      %22 = vector.broadcast %21 : vector<8x1xf32> to vector<8x128xf32>
      %23 = arith.divf %18, %22 : vector<8x128xf32>
      %c0_22 = arith.constant 0 : index
      %c0_23 = arith.constant 0 : index
      %24 = vector.load %arg4[%c0_22, %c0_23] : memref<8x128xf32, #tpu.memory_space<vmem>>, vector<8x128xf32>
      tpu.vector_store %arg4[%c0_22, %c0_23], %23 {strides = array<i32>} : memref<8x128xf32, #tpu.memory_space<vmem>>, vector<8x128xf32>,
    } else {
    }
    return
  }
  func.func @transform_0(%arg0: i32, %arg1: i32) -> (i32, i32, i32) {
    %c0_i32 = arith.constant 0 : i32
    %c0_i32_0 = arith.constant 0 : i32
    return %arg0, %arg1, %c0_i32 : i32, i32, i32
  }
  func.func @transform_1(%arg0: i32, %arg1: i32) -> (i32, i32, i32) {
    %c0_i32 = arith.constant 0 : i32
    %c0_i32_0 = arith.constant 0 : i32
    return %arg0, %arg1, %c0_i32 : i32, i32, i32
  }
  func.func @transform_2(%arg0: i32, %arg1: i32) -> (i32, i32) {
    %c0_i32 = arith.constant 0 : i32
    %c0_i32_0 = arith.constant 0 : i32
    return %arg0, %c0_i32 : i32, i32
  }
}

</mosaic_0001>

<llo_original>
// kernel: tpu_custom_call.1
$region0: #{tpu_custom_call.1}
  #allocation0 [shape = 'u32[]', space=smem, size = 0x4, offset = 0x4, fixed_abs, tag = 'smem constant byte address 0x4 - core index']
  #allocation1 [shape = 'u32[144,128]{1,0:T(1,128)}', space=vmem, size = 0x12000, scoped, tag = 'internal scratch']
  #allocation2 [shape = 'f32[8,1]{1,0:T(8,128)}', space=vmem, size = 0x1000, scoped, tag = 'scratch operand']
  %s0 = inlined_call_operand.vmem [shape: f32[8,16,128], index: 0, kind: input, shape index: {}]
  %s1 = inlined_call_operand.vmem [shape: f32[8,16,1], index: 1, kind: input, shape index: {}]
  %s2 = inlined_call_operand.hbm [shape: f32[8,128], index: 2, kind: output, shape index: {}]
  %s3 = sld [smem:[#allocation0]]
  $region26: #{tpu_custom_call.1} parent=0
    _
  %s5 = ssub.s32 1, %s3
  %s6 = scalar_select 0, %s5, %s3
  $region1: #{tpu_custom_call.1} parent=0
    #allocation3 [shape = 'u8[4096]{0}', space=vmem, size = 0x1000, scoped, tag = 'output window, operand 0, single buffered']
    #allocation4 [shape = 's32[1]{0}', space=sflag, size = 0x4, scoped, tag = 'scoped memory for tpu_custom_call.1']
    %7 = vsyncpa [#allocation4], 0
    // Predicated region
    $region2: #{tpu_custom_call.1} parent=1 // pred_check
      _
    $region3: #{tpu_custom_call.1} parent=1 // pred_check_branch
      %9 = sbr.rel (0) target = $region5
    $region4: #{tpu_custom_call.1} parent=1 // pred_region
      _
    $region5: #{tpu_custom_call.1} parent=1 // pred_fallthru
      _
    // Predicated region
    $region6: #{tpu_custom_call.1} parent=1 // pred_check
      _
    $region7: #{tpu_custom_call.1} parent=1 // pred_check_branch
      %11 = sbr.rel (0) target = $region9
    $region8: #{tpu_custom_call.1} parent=1 // pred_region
      _
    $region9: #{tpu_custom_call.1} parent=1 // pred_fallthru
      _
    %p12 = scmp.eq.s32.totalorder 0, 0
    // Predicated region
    $region10: #{tpu_custom_call.1} parent=1 // pred_check
      %p13 = pneg %p12
    $region11: #{tpu_custom_call.1} parent=1 // pred_check_branch
      %15 = sbr.rel (%p13) target = $region13
    $region12: #{tpu_custom_call.1} parent=1 // pred_region
      %16 = vst [vmem:[#allocation3] sm:$0xff] 0.0
      %vm17 = vcmask 7168
      %18 = vst.msk [vmem:[#allocation2] sm:$0xff] %vm17, 0.0
    $region13: #{tpu_custom_call.1} parent=1 // pred_fallthru
      _
    %v19 = vld [vmem:[%s1] sm:$0xff]
    %v20 = vld [vmem:[%s1 + $0x8] sm:$0xff]
    %v21 = vld [vmem:[%s1 + $0x10] sm:$0xff]
    %v22 = vld [vmem:[%s1 + $0x18] sm:$0xff]
    %v23 = vld [vmem:[%s1 + $0x20] sm:$0xff]
    %v24 = vld [vmem:[%s1 + $0x28] sm:$0xff]
    %v25 = vld [vmem:[%s1 + $0x30] sm:$0xff]
    %v26 = vld [vmem:[%s1 + $0x38] sm:$0xff]
    %v27 = vld [vmem:[%s1 + $0x40] sm:$0xff]
    %v28 = vld [vmem:[%s1 + $0x48] sm:$0xff]
    %v29 = vld [vmem:[%s1 + $0x50] sm:$0xff]
    %v30 = vld [vmem:[%s1 + $0x58] sm:$0xff]
    %v31 = vld [vmem:[%s1 + $0x60] sm:$0xff]
    %v32 = vld [vmem:[%s1 + $0x68] sm:$0xff]
    %v33 = vld [vmem:[%s1 + $0x70] sm:$0xff]
    %v34 = vld [vmem:[%s1 + $0x78] sm:$0xff]
    %v35 = vld [vmem:[%s0] sm:$0xff]
    %v36 = vld [vmem:[%s0 + $0x8] sm:$0xff]
    %v37 = vld [vmem:[%s0 + $0x10] sm:$0xff]
    %v38 = vld [vmem:[%s0 + $0x18] sm:$0xff]
    %v39 = vld [vmem:[%s0 + $0x20] sm:$0xff]
    %v40 = vld [vmem:[%s0 + $0x28] sm:$0xff]
    %v41 = vld [vmem:[%s0 + $0x30] sm:$0xff]
    %v42 = vld [vmem:[%s0 + $0x38] sm:$0xff]
    %v43 = vld [vmem:[%s0 + $0x40] sm:$0xff]
    %v44 = vld [vmem:[%s0 + $0x48] sm:$0xff]
    %v45 = vld [vmem:[%s0 + $0x50] sm:$0xff]
    %v46 = vld [vmem:[%s0 + $0x58] sm:$0xff]
    %v47 = vld [vmem:[%s0 + $0x60] sm:$0xff]
    %v48 = vld [vmem:[%s0 + $0x68] sm:$0xff]
    %v49 = vld [vmem:[%s0 + $0x70] sm:$0xff]
    %v50 = vld [vmem:[%s0 + $0x78] sm:$0xff]
    %v51 = vld [vmem:[#allocation3] sm:$0xff]
    %53 = vset.pattern.permute.xlu0 0
    %54 = vperm.xlu0 %53, %v19
    %v55 = vpop.permute.xlu0 %54
    %58 = vset.pattern.permute.xlu0 0
    %59 = vperm.xlu0 %58, %v20
    %v60 = vpop.permute.xlu0 %59
    %63 = vset.pattern.permute.xlu0 0
    %64 = vperm.xlu0 %63, %v21
    %v65 = vpop.permute.xlu0 %64
    %68 = vset.pattern.permute.xlu0 0
    %69 = vperm.xlu0 %68, %v22
    %v70 = vpop.permute.xlu0 %69
    %73 = vset.pattern.permute.xlu0 0
    %74 = vperm.xlu0 %73, %v23
    %v75 = vpop.permute.xlu0 %74
    %78 = vset.pattern.permute.xlu0 0
    %79 = vperm.xlu0 %78, %v24
    %v80 = vpop.permute.xlu0 %79
    %83 = vset.pattern.permute.xlu0 0
    %84 = vperm.xlu0 %83, %v25
    %v85 = vpop.permute.xlu0 %84
    %88 = vset.pattern.permute.xlu0 0
    %89 = vperm.xlu0 %88, %v26
    %v90 = vpop.permute.xlu0 %89
    %93 = vset.pattern.permute.xlu0 0
    %94 = vperm.xlu0 %93, %v27
    %v95 = vpop.permute.xlu0 %94
    %98 = vset.pattern.permute.xlu0 0
    %99 = vperm.xlu0 %98, %v28
    %v100 = vpop.permute.xlu0 %99
    %103 = vset.pattern.permute.xlu0 0
    %104 = vperm.xlu0 %103, %v29
    %v105 = vpop.permute.xlu0 %104
    %108 = vset.pattern.permute.xlu0 0
    %109 = vperm.xlu0 %108, %v30
    %v110 = vpop.permute.xlu0 %109
    %113 = vset.pattern.permute.xlu0 0
    %114 = vperm.xlu0 %113, %v31
    %v115 = vpop.permute.xlu0 %114
    %118 = vset.pattern.permute.xlu0 0
    %119 = vperm.xlu0 %118, %v32
    %v120 = vpop.permute.xlu0 %119
    %123 = vset.pattern.permute.xlu0 0
    %124 = vperm.xlu0 %123, %v33
    %v125 = vpop.permute.xlu0 %124
    %128 = vset.pattern.permute.xlu0 0
    %129 = vperm.xlu0 %128, %v34
    %v130 = vpop.permute.xlu0 %129
    %v132 = vmul.f32 %v35, %v55
    %v133 = vmul.f32 %v36, %v60
    %v134 = vmul.f32 %v37, %v65
    %v135 = vmul.f32 %v38, %v70
    %v136 = vmul.f32 %v39, %v75
    %v137 = vmul.f32 %v40, %v80
    %v138 = vmul.f32 %v41, %v85
    %v139 = vmul.f32 %v42, %v90
    %v140 = vmul.f32 %v43, %v95
    %v141 = vmul.f32 %v44, %v100
    %v142 = vmul.f32 %v45, %v105
    %v143 = vmul.f32 %v46, %v110
    %v144 = vmul.f32 %v47, %v115
    %v145 = vmul.f32 %v48, %v120
    %v146 = vmul.f32 %v49, %v125
    %v147 = vmul.f32 %v50, %v130
    %v148 = vadd.f32 %v132, %v133
    %v149 = vrot.slane %v148, 4
    %v150 = vadd.f32 %v148, %v149
    %v151 = vrot.slane %v150, 2
    %v152 = vadd.f32 %v150, %v151
    %v153 = vrot.slane %v152, 1
    %v154 = vadd.f32 %v152, %v153
    %v155 = vadd.f32 %v134, %v135
    %v156 = vrot.slane %v155, 4
    %v157 = vadd.f32 %v155, %v156
    %v158 = vrot.slane %v157, 2
    %v159 = vadd.f32 %v157, %v158
    %v160 = vrot.slane %v159, 1
    %v161 = vadd.f32 %v159, %v160
    %v162 = vadd.f32 %v136, %v137
    %v163 = vrot.slane %v162, 4
    %v164 = vadd.f32 %v162, %v163
    %v165 = vrot.slane %v164, 2
    %v166 = vadd.f32 %v164, %v165
    %v167 = vrot.slane %v166, 1
    %v168 = vadd.f32 %v166, %v167
    %v169 = vadd.f32 %v138, %v139
    %v170 = vrot.slane %v169, 4
    %v171 = vadd.f32 %v169, %v170
    %v172 = vrot.slane %v171, 2
    %v173 = vadd.f32 %v171, %v172
    %v174 = vrot.slane %v173, 1
    %v175 = vadd.f32 %v173, %v174
    %v176 = vadd.f32 %v140, %v141
    %v177 = vrot.slane %v176, 4
    %v178 = vadd.f32 %v176, %v177
    %v179 = vrot.slane %v178, 2
    %v180 = vadd.f32 %v178, %v179
    %v181 = vrot.slane %v180, 1
    %v182 = vadd.f32 %v180, %v181
    %v183 = vadd.f32 %v142, %v143
    %v184 = vrot.slane %v183, 4
    %v185 = vadd.f32 %v183, %v184
    %v186 = vrot.slane %v185, 2
    %v187 = vadd.f32 %v185, %v186
    %v188 = vrot.slane %v187, 1
    %v189 = vadd.f32 %v187, %v188
    %v190 = vadd.f32 %v144, %v145
    %v191 = vrot.slane %v190, 4
    %v192 = vadd.f32 %v190, %v191
    %v193 = vrot.slane %v192, 2
    %v194 = vadd.f32 %v192, %v193
    %v195 = vrot.slane %v194, 1
    %v196 = vadd.f32 %v194, %v195
    %v197 = vadd.f32 %v146, %v147
    %v198 = vrot.slane %v197, 4
    %v199 = vadd.f32 %v197, %v198
    %v200 = vrot.slane %v199, 2
    %v201 = vadd.f32 %v199, %v200
    %v202 = vrot.slane %v201, 1
    %v203 = vadd.f32 %v201, %v202
    %vm212 = vcmask 1041409
    %v213 = vsel %vm212, %v161, %v154
    %vm214 = vcmask 1042434
    %v215 = vsel %vm214, %v168, %v213
    %vm216 = vcmask 1043459
    %v217 = vsel %vm216, %v175, %v215
    %vm218 = vcmask 1044484
    %v219 = vsel %vm218, %v182, %v217
    %vm220 = vcmask 1045509
    %v221 = vsel %vm220, %v189, %v219
    %vm222 = vcmask 1046534
    %v223 = vsel %vm222, %v196, %v221
    %vm224 = vcmask 1047559
    %v225 = vsel %vm224, %v203, %v223
    %v227 = vadd.f32 %v51, %v225
    %228 = vst [vmem:[#allocation3] sm:$0xff] %v227
    %v229 = vld [vmem:[#allocation2] sm:$0xff]
    %vm230 = vcmask 7168
    %v231 = vsel %vm230, %v19, 0.0
    %v232 = vsel %vm230, %v20, 0.0
    %v233 = vadd.f32 %v231, %v232
    %v234 = vrot.slane %v233, 4
    %v235 = vadd.f32 %v233, %v234
    %v236 = vrot.slane %v235, 2
    %v237 = vadd.f32 %v235, %v236
    %v238 = vrot.slane %v237, 1
    %v239 = vadd.f32 %v237, %v238
    %v240 = vsel %vm230, %v21, 0.0
    %v241 = vsel %vm230, %v22, 0.0
    %v242 = vadd.f32 %v240, %v241
    %v243 = vrot.slane %v242, 4
    %v244 = vadd.f32 %v242, %v243
    %v245 = vrot.slane %v244, 2
    %v246 = vadd.f32 %v244, %v245
    %v247 = vrot.slane %v246, 1
    %v248 = vadd.f32 %v246, %v247
    %v249 = vsel %vm230, %v23, 0.0
    %v250 = vsel %vm230, %v24, 0.0
    %v251 = vadd.f32 %v249, %v250
    %v252 = vrot.slane %v251, 4
    %v253 = vadd.f32 %v251, %v252
    %v254 = vrot.slane %v253, 2
    %v255 = vadd.f32 %v253, %v254
    %v256 = vrot.slane %v255, 1
    %v257 = vadd.f32 %v255, %v256
    %v258 = vsel %vm230, %v25, 0.0
    %v259 = vsel %vm230, %v26, 0.0
    %v260 = vadd.f32 %v258, %v259
    %v261 = vrot.slane %v260, 4
    %v262 = vadd.f32 %v260, %v261
    %v263 = vrot.slane %v262, 2
    %v264 = vadd.f32 %v262, %v263
    %v265 = vrot.slane %v264, 1
    %v266 = vadd.f32 %v264, %v265
    %v267 = vsel %vm230, %v27, 0.0
    %v268 = vsel %vm230, %v28, 0.0
    %v269 = vadd.f32 %v267, %v268
    %v270 = vrot.slane %v269, 4
    %v271 = vadd.f32 %v269, %v270
    %v272 = vrot.slane %v271, 2
    %v273 = vadd.f32 %v271, %v272
    %v274 = vrot.slane %v273, 1
    %v275 = vadd.f32 %v273, %v274
    %v276 = vsel %vm230, %v29, 0.0
    %v277 = vsel %vm230, %v30, 0.0
    %v278 = vadd.f32 %v276, %v277
    %v279 = vrot.slane %v278, 4
    %v280 = vadd.f32 %v278, %v279
    %v281 = vrot.slane %v280, 2
    %v282 = vadd.f32 %v280, %v281
    %v283 = vrot.slane %v282, 1
    %v284 = vadd.f32 %v282, %v283
    %v285 = vsel %vm230, %v31, 0.0
    %v286 = vsel %vm230, %v32, 0.0
    %v287 = vadd.f32 %v285, %v286
    %v288 = vrot.slane %v287, 4
    %v289 = vadd.f32 %v287, %v288
    %v290 = vrot.slane %v289, 2
    %v291 = vadd.f32 %v289, %v290
    %v292 = vrot.slane %v291, 1
    %v293 = vadd.f32 %v291, %v292
    %v294 = vsel %vm230, %v33, 0.0
    %v295 = vsel %vm230, %v34, 0.0
    %v296 = vadd.f32 %v294, %v295
    %v297 = vrot.slane %v296, 4
    %v298 = vadd.f32 %v296, %v297
    %v299 = vrot.slane %v298, 2
    %v300 = vadd.f32 %v298, %v299
    %v301 = vrot.slane %v300, 1
    %v302 = vadd.f32 %v300, %v301
    %v311 = vsel %vm212, %v248, %v239
    %v312 = vsel %vm214, %v257, %v311
    %v313 = vsel %vm216, %v266, %v312
    %v314 = vsel %vm218, %v275, %v313
    %v315 = vsel %vm220, %v284, %v314
    %v316 = vsel %vm222, %v293, %v315
    %v317 = vsel %vm224, %v302, %v316
    %v319 = vadd.f32 %v229, %v317
    %320 = vst.msk [vmem:[#allocation2] sm:$0xff] %vm230, %v319
    // Predicated region
    $region14: #{tpu_custom_call.1} parent=1 // pred_check
      %p321 = pneg %p12
    $region15: #{tpu_custom_call.1} parent=1 // pred_check_branch
      %323 = sbr.rel (%p321) target = $region17
    $region16: #{tpu_custom_call.1} parent=1 // pred_region
      %v324 = vld [vmem:[#allocation3] sm:$0xff]
      %v325 = vld [vmem:[#allocation2] sm:$0xff]
      %v326 = vmax.f32 %v325, 1.0
      %328 = vset.pattern.permute.xlu0 0
      %329 = vperm.xlu0 %328, %v326
      %v330 = vpop.permute.xlu0 %329
      %v332 = vrcp.pop %v330
      %v333 = vmul.f32 %v324, %v332
      %334 = vst [vmem:[#allocation3] sm:$0xff] %v333
    $region17: #{tpu_custom_call.1} parent=1 // pred_fallthru
      _
    // Predicated region
    $region18: #{tpu_custom_call.1} parent=1 // pred_check
      _
    $region19: #{tpu_custom_call.1} parent=1 // pred_check_branch
      %336 = sbr.rel (0) target = $region21
    $region20: #{tpu_custom_call.1} parent=1 // pred_region
      %s338 = ssub.s32 128, 128
      %339 = vsyncadd [#allocation4], %s338
      %s341 = sshll.u32 [#allocation3], 4
      %s342 = int_to_ptr.vmem [resolvable:$true] %s341
      %344 = dma.vmem_to_hbm [thread:$0]  %s342, 128, %s2, [#allocation4]
    $region21: #{tpu_custom_call.1} parent=1 // pred_fallthru
      _
    // Predicated region
    $region22: #{tpu_custom_call.1} parent=1 // pred_check
      _
    $region23: #{tpu_custom_call.1} parent=1 // pred_check_branch
      %346 = sbr.rel (0) target = $region25
    $region24: #{tpu_custom_call.1} parent=1 // pred_region
      %347 = dma.done [#allocation4], 128
    $region25: #{tpu_custom_call.1} parent=1 // pred_fallthru
      _
    %348 = vsyncpa [#allocation4], 1

</llo_original>
